<compile_context>
chip_gen: v7x
topology: tpu7x:2x2x1
jax: 0.10.0
libtpu: 0.0.40
codegen_flags: <defaults>
</compile_context>

<pallas_src>
import functools

import jax
import jax.numpy as jnp
import numpy as np
from jax.experimental import pallas as pl
from jax.experimental.pallas import tpu as pltpu


def _round_up(x, m):
    return ((x + m - 1) // m) * m


def policy_net_kernel(x_ref, p_ref, out_ref, *, s_pad, h_pad, action_dim, out_c):
    """One batch tile: x_ref (TM, s_pad), p_ref (R, c=h_pad), out_ref (TM, out_c)."""
    # Static row offsets into the packed parameter slab (all 8-row aligned).
    r_w1 = 0
    r_b1 = r_w1 + s_pad
    r_w2 = r_b1 + 8
    r_b2 = r_w2 + h_pad
    r_wh = r_b2 + 8
    r_bh = r_wh + h_pad

    x = x_ref[...]                                       # (TM, s_pad)

    # fc1 -> tanh   (padded columns stay exactly 0: 0*w + 0 bias -> tanh(0)=0)
    w1 = p_ref[pl.ds(r_w1, s_pad), :]                    # (s_pad, c)
    b1 = p_ref[pl.ds(r_b1, 1), :]                        # (1, c)
    h1 = jnp.tanh(jnp.dot(x, w1, preferred_element_type=jnp.float32) + b1)

    # fc2 -> tanh
    w2 = p_ref[pl.ds(r_w2, h_pad), :]                    # (c, c)
    b2 = p_ref[pl.ds(r_b2, 1), :]
    h2 = jnp.tanh(jnp.dot(h1, w2, preferred_element_type=jnp.float32) + b2)

    # Fused heads: [wmu | wstd] -> one matmul over only the out_c useful lanes.
    # lanes [0,A) = mu_linear, [A,2A) = std_linear.
    wh = p_ref[pl.ds(r_wh, h_pad), pl.ds(0, out_c)]      # (c, out_c)
    bh = p_ref[pl.ds(r_bh, 1), pl.ds(0, out_c)]          # (1, out_c)
    heads = jnp.dot(h2, wh, preferred_element_type=jnp.float32) + bh  # (TM, out_c)

    # Shared-exp activations (one EUP exp feeds both tanh and softplus):
    #   softplus(x) = max(x, 0) + log1p(exp(-|x|))
    #   tanh(|x|)   = (1 - e^2) / (1 + e^2),  e = exp(-|x|);  sign restored below.
    e = jnp.exp(-jnp.abs(heads))
    e2 = e * e
    tanh_abs = (1.0 - e2) / (1.0 + e2)
    tanh_h = jnp.where(heads < 0.0, -tanh_abs, tanh_abs)
    mu_act = (2.0 * np.pi) * tanh_h
    std_act = jnp.maximum(heads, 0.0) + jnp.log1p(e)

    lane = jax.lax.broadcasted_iota(jnp.int32, heads.shape, dimension=1)
    # Single lane-dense (multiple-of-128 wide, unmasked) store; wrapper slices mu/std.
    out_ref[...] = jnp.where(lane < action_dim, mu_act, std_act)


def _dims(state_dim, hidden_dim, action_dim):
    s_pad = _round_up(max(state_dim, 1), 8)
    h_pad = _round_up(hidden_dim, 128)          # lane-dense activations/weights
    c = h_pad
    out_c = _round_up(2 * action_dim, 128)      # output width decoupled from h_pad
    assert 2 * action_dim <= c, "action_dim too large for fused head slab"
    return s_pad, h_pad, c, out_c


def pack_params(params):
    """Pack all weights/biases ONCE into one (rows, c) f32 slab, zero-padded.

    Do this at init time (outside the per-call path); the forward only takes
    the packed slab.
    """
    state_dim, hidden_dim = params["w1"].shape
    action_dim = params["wmu"].shape[1]
    s_pad, h_pad, c, _ = _dims(state_dim, hidden_dim, action_dim)

    def pad2(a, rows, cols):
        a = a.astype(jnp.float32)
        return jnp.pad(a, ((0, rows - a.shape[0]), (0, cols - a.shape[1])))

    w_heads = jnp.concatenate([params["wmu"], params["wstd"]], axis=1)   # [H, 2A]
    b_heads = jnp.concatenate([params["bmu"], params["bstd"]], axis=1)   # [1, 2A]
    slab = jnp.concatenate([
        pad2(params["w1"], s_pad, c),     # rows [0, s_pad)
        pad2(params["b1"], 8, c),         # rows [s_pad, s_pad+8)
        pad2(params["w2"], h_pad, c),     # ...
        pad2(params["b2"], 8, c),
        pad2(w_heads, h_pad, c),
        pad2(b_heads, 8, c),
    ], axis=0)
    return slab


def _batch_tiling(B):
    """Pick (tm, b_pad, grid) — big tiles, and >=2 (even) tiles for B>8 so the
    parallel batch axis shards across both v7x TensorCores."""
    tm_cap = 1024
    if B <= 8:
        n_tiles = 1
    else:
        n_tiles = 2 * pl.cdiv(B, 2 * tm_cap)   # even tile count, each <= ~tm_cap
    tm = _round_up(pl.cdiv(B, n_tiles), 8)
    b_pad = _round_up(B, tm)
    grid = (b_pad // tm,)
    return tm, b_pad, grid


@functools.partial(jax.jit, static_argnames=("state_dim", "hidden_dim", "action_dim"))
def policy_net_forward(x, slab, *, state_dim, hidden_dim, action_dim):
    """x: [B, state_dim] f32, slab: pre-packed params. Returns (mu, std) [B, A]."""
    s_pad, h_pad, c, out_c = _dims(state_dim, hidden_dim, action_dim)
    B = x.shape[0]
    tm, b_pad, grid = _batch_tiling(B)

    x_pad = jnp.pad(x.astype(jnp.float32),
                    ((0, b_pad - B), (0, s_pad - state_dim)))

    kernel = functools.partial(policy_net_kernel, s_pad=s_pad, h_pad=h_pad,
                               action_dim=action_dim, out_c=out_c)

    out = pl.pallas_call(
        kernel,
        out_shape=jax.ShapeDtypeStruct((b_pad, out_c), jnp.float32),
        grid=grid,
        in_specs=[
            pl.BlockSpec((tm, s_pad), lambda i: (i, 0)),       # x: tiled on batch
            pl.BlockSpec(slab.shape, lambda i: (0, 0)),        # params: VMEM-resident
        ],
        out_specs=pl.BlockSpec((tm, out_c), lambda i: (i, 0)),  # lane-dense slab
        compiler_params=pltpu.CompilerParams(
            dimension_semantics=("parallel",)),
    )(x_pad, slab)

    heads = out[:B, :2 * action_dim]            # one slice of the output slab
    mu = heads[:, :action_dim]
    std = heads[:, action_dim:]
    return mu, std


def init_params(key, state_dim, hidden_dim, action_dim):
    """Deterministic init mimicking torch.nn.Linear default (uniform +-1/sqrt(fan_in))."""
    ks = jax.random.split(key, 8)

    def linear(kw, kb, fan_in, fan_out):
        bound = 1.0 / np.sqrt(fan_in)
        w = jax.random.uniform(kw, (fan_in, fan_out), jnp.float32, -bound, bound)
        b = jax.random.uniform(kb, (1, fan_out), jnp.float32, -bound, bound)
        return w, b

    w1, b1 = linear(ks[0], ks[1], state_dim, hidden_dim)
    w2, b2 = linear(ks[2], ks[3], hidden_dim, hidden_dim)
    wmu, bmu = linear(ks[4], ks[5], hidden_dim, action_dim)
    wstd, bstd = linear(ks[6], ks[7], hidden_dim, action_dim)
    return dict(w1=w1, b1=b1, w2=w2, b2=b2,
                wmu=wmu, bmu=bmu, wstd=wstd, bstd=bstd)


def reference_forward(x, p):
    h1 = jnp.tanh(x @ p["w1"] + p["b1"])
    h2 = jnp.tanh(h1 @ p["w2"] + p["b2"])
    mu = 2.0 * np.pi * jnp.tanh(h2 @ p["wmu"] + p["bmu"])
    std = jax.nn.softplus(h2 @ p["wstd"] + p["bstd"])
    return mu, std


if __name__ == "__main__":
    state_dim, hidden_dim, action_dim = 8, 32, 4
    batch = 2

    key = jax.random.PRNGKey(0)
    kx, kp = jax.random.split(key)
    x = jax.random.normal(kx, (batch, state_dim), jnp.float32)
    params = init_params(kp, state_dim, hidden_dim, action_dim)

    # Pack the parameter slab ONCE (outside the per-call hot path).
    slab = jax.block_until_ready(pack_params(params))

    mu, std = policy_net_forward(x, slab, state_dim=state_dim,
                                 hidden_dim=hidden_dim, action_dim=action_dim)
    jax.block_until_ready((mu, std))

    mu_ref, std_ref = reference_forward(x, params)
    assert mu.shape == (batch, action_dim) and std.shape == (batch, action_dim)
    assert jnp.allclose(mu, mu_ref, atol=1e-5, rtol=1e-5)
    assert jnp.allclose(std, std_ref, atol=1e-5, rtol=1e-5)
    assert bool(jnp.all(jnp.isfinite(mu))) and bool(jnp.all(std > 0))

    print("KERNEL_OK")
</pallas_src>

<mosaic_0001>
module attributes {stable_mosaic.version = 11 : i64} {
  func.func @policy_net_kernel(%arg0: i32, %arg1: memref<8x8xf32, #tpu.memory_space<vmem>>, %arg2: memref<288x128xf32, #tpu.memory_space<vmem>>, %arg3: memref<8x128xf32, #tpu.memory_space<vmem>>) attributes {dimension_semantics = [#tpu.dimension_semantics<parallel>], iteration_bounds = array<i64: 1>, scalar_prefetch = 0 : i64, scratch_operands = 0 : i64, tpu.core_type = #tpu.core_type<tc>, window_params = [{transform_indices = @transform_0, window_bounds = array<i64: 8, 8>}, {pipeline_mode = #tpu.pipeline_mode<synchronous>, transform_indices = @transform_1, window_bounds = array<i64: 288, 128>}, {transform_indices = @transform_2, window_bounds = array<i64: 8, 128>}]} {
    %c0 = arith.constant 0 : index
    %c0_0 = arith.constant 0 : index
    %0 = vector.load %arg1[%c0, %c0_0] : memref<8x8xf32, #tpu.memory_space<vmem>>, vector<8x8xf32>
    %c0_1 = arith.constant 0 : index
    %c0_2 = arith.constant 0 : index
    %1 = vector.load %arg2[%c0_1, %c0_2] : memref<288x128xf32, #tpu.memory_space<vmem>>, vector<8x128xf32>
    %c8 = arith.constant 8 : index
    %c0_3 = arith.constant 0 : index
    %2 = vector.load %arg2[%c8, %c0_3] : memref<288x128xf32, #tpu.memory_space<vmem>>, vector<1x128xf32>
    %cst = arith.constant dense<0.000000e+00> : vector<8x128xf32>
    %3 = tpu.matmul %0, %1, %cst {dimension_numbers = #tpu.dot_dimension_numbers<[1], [0], [0], [1], [0, 0, 1, 1], [], []>} : vector<8x8xf32>, vector<8x128xf32>, vector<8x128xf32> -> vector<8x128xf32>
    %4 = vector.broadcast %2 : vector<1x128xf32> to vector<8x128xf32>
    %5 = arith.addf %3, %4 : vector<8x128xf32>
    %6 = math.tanh %5 : vector<8x128xf32>
    %c16 = arith.constant 16 : index
    %c0_4 = arith.constant 0 : index
    %7 = vector.load %arg2[%c16, %c0_4] : memref<288x128xf32, #tpu.memory_space<vmem>>, vector<128x128xf32>
    %c144 = arith.constant 144 : index
    %c0_5 = arith.constant 0 : index
    %8 = vector.load %arg2[%c144, %c0_5] : memref<288x128xf32, #tpu.memory_space<vmem>>, vector<1x128xf32>
    %cst_6 = arith.constant dense<0.000000e+00> : vector<8x128xf32>
    %9 = tpu.matmul %6, %7, %cst_6 {dimension_numbers = #tpu.dot_dimension_numbers<[1], [0], [0], [1], [0, 0, 1, 1], [], []>} : vector<8x128xf32>, vector<128x128xf32>, vector<8x128xf32> -> vector<8x128xf32>
    %10 = vector.broadcast %8 : vector<1x128xf32> to vector<8x128xf32>
    %11 = arith.addf %9, %10 : vector<8x128xf32>
    %12 = math.tanh %11 : vector<8x128xf32>
    %c152 = arith.constant 152 : index
    %c0_7 = arith.constant 0 : index
    %13 = vector.load %arg2[%c152, %c0_7] : memref<288x128xf32, #tpu.memory_space<vmem>>, vector<128x128xf32>
    %c280 = arith.constant 280 : index
    %c0_8 = arith.constant 0 : index
    %14 = vector.load %arg2[%c280, %c0_8] : memref<288x128xf32, #tpu.memory_space<vmem>>, vector<1x128xf32>
    %cst_9 = arith.constant dense<0.000000e+00> : vector<8x128xf32>
    %15 = tpu.matmul %12, %13, %cst_9 {dimension_numbers = #tpu.dot_dimension_numbers<[1], [0], [0], [1], [0, 0, 1, 1], [], []>} : vector<8x128xf32>, vector<128x128xf32>, vector<8x128xf32> -> vector<8x128xf32>
    %16 = vector.broadcast %14 : vector<1x128xf32> to vector<8x128xf32>
    %17 = arith.addf %15, %16 : vector<8x128xf32>
    %18 = math.absf %17 : vector<8x128xf32>
    %cst_10 = arith.constant 0.000000e+00 : f32
    %19 = vector.broadcast %cst_10 : f32 to vector<8x128xf32>
    %20 = arith.subf %19, %18 : vector<8x128xf32>
    %21 = math.exp %20 : vector<8x128xf32>
    %22 = arith.mulf %21, %21 : vector<8x128xf32>
    %cst_11 = arith.constant 1.000000e+00 : f32
    %23 = vector.broadcast %cst_11 : f32 to vector<8x128xf32>
    %24 = arith.subf %23, %22 : vector<8x128xf32>
    %cst_12 = arith.constant 1.000000e+00 : f32
    %25 = vector.broadcast %cst_12 : f32 to vector<8x128xf32>
    %26 = arith.addf %25, %22 : vector<8x128xf32>
    %27 = arith.divf %24, %26 : vector<8x128xf32>
    %cst_13 = arith.constant 0.000000e+00 : f32
    %28 = vector.broadcast %cst_13 : f32 to vector<8x128xf32>
    %29 = arith.cmpf olt, %17, %28 : vector<8x128xf32>
    %cst_14 = arith.constant 0.000000e+00 : f32
    %30 = vector.broadcast %cst_14 : f32 to vector<8x128xf32>
    %31 = arith.subf %30, %27 : vector<8x128xf32>
    %32 = arith.select %29, %31, %27 : vector<8x128xi1>, vector<8x128xf32>
    %cst_15 = arith.constant 6.28318548 : f32
    %33 = vector.broadcast %cst_15 : f32 to vector<8x128xf32>
    %34 = arith.mulf %33, %32 : vector<8x128xf32>
    %cst_16 = arith.constant 0.000000e+00 : f32
    %35 = vector.broadcast %cst_16 : f32 to vector<8x128xf32>
    %36 = arith.maximumf %17, %35 : vector<8x128xf32>
    %37 = math.log1p %21 : vector<8x128xf32>
    %38 = arith.addf %36, %37 : vector<8x128xf32>
    %39 = tpu.iota {dimensions = array<i32: 1>} : vector<8x128xi32>
    %c4_i32 = arith.constant 4 : i32
    %40 = vector.broadcast %c4_i32 : i32 to vector<8x128xi32>
    %41 = arith.cmpi slt, %39, %40 : vector<8x128xi32>
    %42 = arith.select %41, %34, %38 : vector<8x128xi1>, vector<8x128xf32>
    %c0_17 = arith.constant 0 : index
    %c0_18 = arith.constant 0 : index
    %43 = vector.load %arg3[%c0_17, %c0_18] : memref<8x128xf32, #tpu.memory_space<vmem>>, vector<8x128xf32>
    tpu.vector_store %arg3[%c0_17, %c0_18], %42 {strides = array<i32>} : memref<8x128xf32, #tpu.memory_space<vmem>>, vector<8x128xf32>,
    return
  }
  func.func @transform_0(%arg0: i32) -> (i32, i32) {
    %c0_i32 = arith.constant 0 : i32
    %c0_i32_0 = arith.constant 0 : i32
    return %arg0, %c0_i32 : i32, i32
  }
  func.func @transform_1(%arg0: i32) -> (i32, i32) {
    %c0_i32 = arith.constant 0 : i32
    %c0_i32_0 = arith.constant 0 : i32
    %c0_i32_1 = arith.constant 0 : i32
    return %c0_i32, %c0_i32_0 : i32, i32
  }
  func.func @transform_2(%arg0: i32) -> (i32, i32) {
    %c0_i32 = arith.constant 0 : i32
    %c0_i32_0 = arith.constant 0 : i32
    return %arg0, %c0_i32 : i32, i32
  }
}

</mosaic_0001>

<llo_original>
// kernel: policy_net_forward.1
$region0: #{policy_net_forward.1}
  #allocation0 [shape = 'u32[]', space=smem, size = 0x4, offset = 0x4, fixed_abs, tag = 'smem constant byte address 0x4 - core index']
  #allocation1 [shape = 'u32[144,128]{1,0:T(1,128)}', space=vmem, size = 0x12000, scoped, tag = 'internal scratch']
  %s0 = inlined_call_operand.vmem [shape: f32[8,8], index: 0, kind: input, shape index: {}]
  %s1 = inlined_call_operand.hbm [shape: f32[288,128], index: 1, kind: input, shape index: {}]
  %s2 = inlined_call_operand.vmem [shape: f32[8,128], index: 2, kind: output, shape index: {}]
  %s3 = sld [smem:[#allocation0]]
  $region22: #{policy_net_forward.1} parent=0
    _
  %s5 = ssub.s32 1, %s3
  %s6 = scalar_select 0, %s5, %s3
  $region1: #{policy_net_forward.1} parent=0
    #allocation2 [shape = 'u8[147456]{0}', space=vmem, size = 0x24000, scoped, tag = 'input window, operand 1, single buffered']
    #allocation3 [shape = 's32[1]{0}', space=sflag, size = 0x4, scoped, tag = 'scoped memory for policy_net_forward.1']
    %7 = vsyncpa [#allocation3], 0
    // Predicated region
    $region2: #{policy_net_forward.1} parent=1 // pred_check
      _
    $region3: #{policy_net_forward.1} parent=1 // pred_check_branch
      %9 = sbr.rel (0) target = $region5
    $region4: #{policy_net_forward.1} parent=1 // pred_region
      _
    $region5: #{policy_net_forward.1} parent=1 // pred_fallthru
      _
    // Predicated region
    $region6: #{policy_net_forward.1} parent=1 // pred_check
      _
    $region7: #{policy_net_forward.1} parent=1 // pred_check_branch
      %11 = sbr.rel (0) target = $region9
    $region8: #{policy_net_forward.1} parent=1 // pred_region
      %s13 = ssub.s32 4608, 4608
      %14 = vsyncadd [#allocation3], %s13
      %s15 = sshll.u32 [#allocation2], 4
      %s16 = int_to_ptr.vmem [resolvable:$true] %s15
      %21 = dma.hbm_to_vmem [thread:$0]  %s1, 4608, %s16, [#allocation3], 128, 128, 8
    $region9: #{policy_net_forward.1} parent=1 // pred_fallthru
      _
    // Predicated region
    $region10: #{policy_net_forward.1} parent=1 // pred_check
      _
    $region11: #{policy_net_forward.1} parent=1 // pred_check_branch
      %23 = sbr.rel (0) target = $region13
    $region12: #{policy_net_forward.1} parent=1 // pred_region
      %24 = dma.done [#allocation3], 4608
    $region13: #{policy_net_forward.1} parent=1 // pred_fallthru
      _
    %v25 = vld [vmem:[%s0] sm:$0xff]
    %v26 = vld [vmem:[#allocation2] sm:$0xff]
    %v27 = vld [vmem:[#allocation2 + $0x8] sm:$0x1]
    %v28 = vlaneseq
    %v29 = vshrl.u32 %v28, 7
    %v30 = vsub.s32 0, %v29
    %v31 = vrot.slane %v27, %v30
    %vm32 = vcmask 64512
    %v34 = vsel %vm32, %v25, 0
    %36 = vmatprep.subr.mxu0 0.0
    %37 = vmatpush1.msra.mxu0 %v26
    %38 = vmatprep.subr.mxu0 0.0
    %39 = vmatpush1.msra.mxu0 0.0
    %40 = vmatprep.subr.mxu0 0.0
    %41 = vmatpush1.msra.mxu0 0.0
    %42 = vmatprep.subr.mxu0 0.0
    %43 = vmatpush1.msra.mxu0 0.0
    %44 = vmatprep.subr.mxu0 0.0
    %45 = vmatpush1.msra.mxu0 0.0
    %46 = vmatprep.subr.mxu0 0.0
    %47 = vmatpush1.msra.mxu0 0.0
    %48 = vmatprep.subr.mxu0 0.0
    %49 = vmatpush1.msra.mxu0 0.0
    %50 = vmatprep.subr.mxu0 0.0
    %51 = vmatpush1.msra.mxu0 0.0
    %52 = vmatprep.subr.mxu0 0.0
    %53 = vmatpush1.msra.mxu0 0.0
    %54 = vmatprep.subr.mxu0 0.0
    %55 = vmatpush1.msra.mxu0 0.0
    %56 = vmatprep.subr.mxu0 0.0
    %57 = vmatpush1.msra.mxu0 0.0
    %58 = vmatprep.subr.mxu0 0.0
    %59 = vmatpush1.msra.mxu0 0.0
    %60 = vmatprep.subr.mxu0 0.0
    %61 = vmatpush1.msra.mxu0 0.0
    %62 = vmatprep.subr.mxu0 0.0
    %63 = vmatpush1.msra.mxu0 0.0
    %64 = vmatprep.subr.mxu0 0.0
    %65 = vmatpush1.msra.mxu0 0.0
    %66 = vmatprep.subr.mxu0 0.0
    %67 = vmatpush1.msra.mxu0 0.0
    %68 = vmatprep.subr.mxu0 0.0
    %69 = vmatpush1.msra.mxu0 0.0
    %70 = vmatprep.subr.mxu0 0.0
    %71 = vmatpush1.msra.mxu0 0.0
    %72 = vmatprep.subr.mxu0 0.0
    %73 = vmatpush1.msra.mxu0 0.0
    %74 = vmatprep.subr.mxu0 0.0
    %75 = vmatpush1.msra.mxu0 0.0
    %76 = vmatprep.subr.mxu0 0.0
    %77 = vmatpush1.msra.mxu0 0.0
    %78 = vmatprep.subr.mxu0 0.0
    %79 = vmatpush1.msra.mxu0 0.0
    %80 = vmatprep.subr.mxu0 0.0
    %81 = vmatpush1.msra.mxu0 0.0
    %82 = vmatprep.subr.mxu0 0.0
    %83 = vmatpush1.msra.mxu0 0.0
    %84 = vmatprep.subr.mxu0 0.0
    %85 = vmatpush1.msra.mxu0 0.0
    %86 = vmatprep.subr.mxu0 0.0
    %87 = vmatpush1.msra.mxu0 0.0
    %88 = vmatprep.subr.mxu0 0.0
    %89 = vmatpush1.msra.mxu0 0.0
    %90 = vmatprep.subr.mxu0 0.0
    %91 = vmatpush1.msra.mxu0 0.0
    %92 = vmatprep.subr.mxu0 0.0
    %93 = vmatpush1.msra.mxu0 0.0
    %94 = vmatprep.subr.mxu0 0.0
    %95 = vmatpush1.msra.mxu0 0.0
    %96 = vmatprep.subr.mxu0 0.0
    %97 = vmatpush1.msra.mxu0 0.0
    %98 = vmatprep.subr.mxu0 0.0
    %99 = vmatpush1.msra.mxu0 0.0
    %100 = vmatprep.mubr.f32.mxu0 0.0
    %101 = vmatmul.mubr.f32.gmra.mrb[0].mxu0 %v34
    %v102 = vpop.f32.mrb[0].mxu0
    %v103 = vadd.f32 %v31, %v102
    %v104 = vpop.f32.mrb[0].mxu0
    %105 = vdwg.mxu0
    %v106 = vtanh.pop %v103
    %v107 = vld [vmem:[#allocation2 + $0x10] sm:$0xff]
    %v108 = vld [vmem:[#allocation2 + $0x18] sm:$0xff]
    %v109 = vld [vmem:[#allocation2 + $0x20] sm:$0xff]
    %v110 = vld [vmem:[#allocation2 + $0x28] sm:$0xff]
    %v111 = vld [vmem:[#allocation2 + $0x30] sm:$0xff]
    %v112 = vld [vmem:[#allocation2 + $0x38] sm:$0xff]
    %v113 = vld [vmem:[#allocation2 + $0x40] sm:$0xff]
    %v114 = vld [vmem:[#allocation2 + $0x48] sm:$0xff]
    %v115 = vld [vmem:[#allocation2 + $0x50] sm:$0xff]
    %v116 = vld [vmem:[#allocation2 + $0x58] sm:$0xff]
    %v117 = vld [vmem:[#allocation2 + $0x60] sm:$0xff]
    %v118 = vld [vmem:[#allocation2 + $0x68] sm:$0xff]
    %v119 = vld [vmem:[#allocation2 + $0x70] sm:$0xff]
    %v120 = vld [vmem:[#allocation2 + $0x78] sm:$0xff]
    %v121 = vld [vmem:[#allocation2 + $0x80] sm:$0xff]
    %v122 = vld [vmem:[#allocation2 + $0x88] sm:$0xff]
    %v123 = vld [vmem:[#allocation2 + $0x90] sm:$0x1]
    %v124 = vlaneseq
    %v125 = vshrl.u32 %v124, 7
    %v126 = vsub.s32 0, %v125
    %v127 = vrot.slane %v123, %v126
    %128 = vmatprep.subr.mxu0 0.0
    %129 = vmatpush1.msra.mxu0 %v107
    %130 = vmatprep.subr.mxu0 0.0
    %131 = vmatpush1.msra.mxu0 %v108
    %132 = vmatprep.subr.mxu0 0.0
    %133 = vmatpush1.msra.mxu0 %v109
    %134 = vmatprep.subr.mxu0 0.0
    %135 = vmatpush1.msra.mxu0 %v110
    %136 = vmatprep.subr.mxu0 0.0
    %137 = vmatpush1.msra.mxu0 %v111
    %138 = vmatprep.subr.mxu0 0.0
    %139 = vmatpush1.msra.mxu0 %v112
    %140 = vmatprep.subr.mxu0 0.0
    %141 = vmatpush1.msra.mxu0 %v113
    %142 = vmatprep.subr.mxu0 0.0
    %143 = vmatpush1.msra.mxu0 %v114
    %144 = vmatprep.subr.mxu0 0.0
    %145 = vmatpush1.msra.mxu0 %v115
    %146 = vmatprep.subr.mxu0 0.0
    %147 = vmatpush1.msra.mxu0 %v116
    %148 = vmatprep.subr.mxu0 0.0
    %149 = vmatpush1.msra.mxu0 %v117
    %150 = vmatprep.subr.mxu0 0.0
    %151 = vmatpush1.msra.mxu0 %v118
    %152 = vmatprep.subr.mxu0 0.0
    %153 = vmatpush1.msra.mxu0 %v119
    %154 = vmatprep.subr.mxu0 0.0
    %155 = vmatpush1.msra.mxu0 %v120
    %156 = vmatprep.subr.mxu0 0.0
    %157 = vmatpush1.msra.mxu0 %v121
    %158 = vmatprep.subr.mxu0 0.0
    %159 = vmatpush1.msra.mxu0 %v122
    %160 = vmatprep.subr.mxu0 0.0
    %161 = vmatpush1.msra.mxu0 0.0
    %162 = vmatprep.subr.mxu0 0.0
    %163 = vmatpush1.msra.mxu0 0.0
    %164 = vmatprep.subr.mxu0 0.0
    %165 = vmatpush1.msra.mxu0 0.0
    %166 = vmatprep.subr.mxu0 0.0
    %167 = vmatpush1.msra.mxu0 0.0
    %168 = vmatprep.subr.mxu0 0.0
    %169 = vmatpush1.msra.mxu0 0.0
    %170 = vmatprep.subr.mxu0 0.0
    %171 = vmatpush1.msra.mxu0 0.0
    %172 = vmatprep.subr.mxu0 0.0
    %173 = vmatpush1.msra.mxu0 0.0
    %174 = vmatprep.subr.mxu0 0.0
    %175 = vmatpush1.msra.mxu0 0.0
    %176 = vmatprep.subr.mxu0 0.0
    %177 = vmatpush1.msra.mxu0 0.0
    %178 = vmatprep.subr.mxu0 0.0
    %179 = vmatpush1.msra.mxu0 0.0
    %180 = vmatprep.subr.mxu0 0.0
    %181 = vmatpush1.msra.mxu0 0.0
    %182 = vmatprep.subr.mxu0 0.0
    %183 = vmatpush1.msra.mxu0 0.0
    %184 = vmatprep.subr.mxu0 0.0
    %185 = vmatpush1.msra.mxu0 0.0
    %186 = vmatprep.subr.mxu0 0.0
    %187 = vmatpush1.msra.mxu0 0.0
    %188 = vmatprep.subr.mxu0 0.0
    %189 = vmatpush1.msra.mxu0 0.0
    %190 = vmatprep.subr.mxu0 0.0
    %191 = vmatpush1.msra.mxu0 0.0
    %192 = vmatprep.mubr.f32.mxu0 0.0
    %193 = vmatmul.mubr.f32.gmra.mrb[0].mxu0 %v106
    %v194 = vpop.f32.mrb[0].mxu0
    %v195 = vadd.f32 %v127, %v194
    %v196 = vpop.f32.mrb[0].mxu0
    %197 = vdwg.mxu0
    %v198 = vtanh.pop %v195
    %v199 = vld [vmem:[#allocation2 + $0x98] sm:$0xff]
    %v200 = vld [vmem:[#allocation2 + $0xa0] sm:$0xff]
    %v201 = vld [vmem:[#allocation2 + $0xa8] sm:$0xff]
    %v202 = vld [vmem:[#allocation2 + $0xb0] sm:$0xff]
    %v203 = vld [vmem:[#allocation2 + $0xb8] sm:$0xff]
    %v204 = vld [vmem:[#allocation2 + $0xc0] sm:$0xff]
    %v205 = vld [vmem:[#allocation2 + $0xc8] sm:$0xff]
    %v206 = vld [vmem:[#allocation2 + $0xd0] sm:$0xff]
    %v207 = vld [vmem:[#allocation2 + $0xd8] sm:$0xff]
    %v208 = vld [vmem:[#allocation2 + $0xe0] sm:$0xff]
    %v209 = vld [vmem:[#allocation2 + $0xe8] sm:$0xff]
    %v210 = vld [vmem:[#allocation2 + $0xf0] sm:$0xff]
    %v211 = vld [vmem:[#allocation2 + $0xf8] sm:$0xff]
    %v212 = vld [vmem:[#allocation2 + $0x100] sm:$0xff]
    %v213 = vld [vmem:[#allocation2 + $0x108] sm:$0xff]
    %v214 = vld [vmem:[#allocation2 + $0x110] sm:$0xff]
    %v215 = vld [vmem:[#allocation2 + $0x118] sm:$0x1]
    %v216 = vlaneseq
    %v217 = vshrl.u32 %v216, 7
    %v218 = vsub.s32 0, %v217
    %v219 = vrot.slane %v215, %v218
    %220 = vmatprep.subr.mxu0 0.0
    %221 = vmatpush1.msra.mxu0 %v199
    %222 = vmatprep.subr.mxu0 0.0
    %223 = vmatpush1.msra.mxu0 %v200
    %224 = vmatprep.subr.mxu0 0.0
    %225 = vmatpush1.msra.mxu0 %v201
    %226 = vmatprep.subr.mxu0 0.0
    %227 = vmatpush1.msra.mxu0 %v202
    %228 = vmatprep.subr.mxu0 0.0
    %229 = vmatpush1.msra.mxu0 %v203
    %230 = vmatprep.subr.mxu0 0.0
    %231 = vmatpush1.msra.mxu0 %v204
    %232 = vmatprep.subr.mxu0 0.0
    %233 = vmatpush1.msra.mxu0 %v205
    %234 = vmatprep.subr.mxu0 0.0
    %235 = vmatpush1.msra.mxu0 %v206
    %236 = vmatprep.subr.mxu0 0.0
    %237 = vmatpush1.msra.mxu0 %v207
    %238 = vmatprep.subr.mxu0 0.0
    %239 = vmatpush1.msra.mxu0 %v208
    %240 = vmatprep.subr.mxu0 0.0
    %241 = vmatpush1.msra.mxu0 %v209
    %242 = vmatprep.subr.mxu0 0.0
    %243 = vmatpush1.msra.mxu0 %v210
    %244 = vmatprep.subr.mxu0 0.0
    %245 = vmatpush1.msra.mxu0 %v211
    %246 = vmatprep.subr.mxu0 0.0
    %247 = vmatpush1.msra.mxu0 %v212
    %248 = vmatprep.subr.mxu0 0.0
    %249 = vmatpush1.msra.mxu0 %v213
    %250 = vmatprep.subr.mxu0 0.0
    %251 = vmatpush1.msra.mxu0 %v214
    %252 = vmatprep.subr.mxu0 0.0
    %253 = vmatpush1.msra.mxu0 0.0
    %254 = vmatprep.subr.mxu0 0.0
    %255 = vmatpush1.msra.mxu0 0.0
    %256 = vmatprep.subr.mxu0 0.0
    %257 = vmatpush1.msra.mxu0 0.0
    %258 = vmatprep.subr.mxu0 0.0
    %259 = vmatpush1.msra.mxu0 0.0
    %260 = vmatprep.subr.mxu0 0.0
    %261 = vmatpush1.msra.mxu0 0.0
    %262 = vmatprep.subr.mxu0 0.0
    %263 = vmatpush1.msra.mxu0 0.0
    %264 = vmatprep.subr.mxu0 0.0
    %265 = vmatpush1.msra.mxu0 0.0
    %266 = vmatprep.subr.mxu0 0.0
    %267 = vmatpush1.msra.mxu0 0.0
    %268 = vmatprep.subr.mxu0 0.0
    %269 = vmatpush1.msra.mxu0 0.0
    %270 = vmatprep.subr.mxu0 0.0
    %271 = vmatpush1.msra.mxu0 0.0
    %272 = vmatprep.subr.mxu0 0.0
    %273 = vmatpush1.msra.mxu0 0.0
    %274 = vmatprep.subr.mxu0 0.0
    %275 = vmatpush1.msra.mxu0 0.0
    %276 = vmatprep.subr.mxu0 0.0
    %277 = vmatpush1.msra.mxu0 0.0
    %278 = vmatprep.subr.mxu0 0.0
    %279 = vmatpush1.msra.mxu0 0.0
    %280 = vmatprep.subr.mxu0 0.0
    %281 = vmatpush1.msra.mxu0 0.0
    %282 = vmatprep.subr.mxu0 0.0
    %283 = vmatpush1.msra.mxu0 0.0
    %284 = vmatprep.mubr.f32.mxu0 0.0
    %285 = vmatmul.mubr.f32.gmra.mrb[0].mxu0 %v198
    %v286 = vpop.f32.mrb[0].mxu0
    %v287 = vadd.f32 %v219, %v286
    %v288 = vpop.f32.mrb[0].mxu0
    %289 = vdwg.mxu0
    %v290 = vand.u32 2147483647, %v287
    %v291 = vsub.f32 0.0, %v290
    %v292 = vmul.f32 %v291, 1.442695
    %v293 = vpow.pop %v292
    %v294 = vmul.f32 %v293, %v293
    %v295 = vsub.f32 1.0, %v294
    %v296 = vadd.f32 %v294, 1.0
    %v297 = vrcp.pop %v296
    %v298 = vmul.f32 %v295, %v297
    %vm299 = vcmp.lt.f32.partialorder %v287, 0.0
    %v300 = vsub.f32 0.0, %v298
    %v301 = vsel %vm299, %v300, %v298
    %v302 = vmul.f32 %v301, 6.2831855
    %v303 = vmax.f32 %v287, 0.0
    %v304 = vadd.f32 %v293, 1.0
    %v305 = vlog2.pop %v304
    %v306 = vmul.f32 %v305, 0.6931472
    %v307 = vmul.f32 -0.5, %v293
    %v308 = vadd.f32 %v307, 1.0
    %v309 = vmul.f32 %v308, %v293
    %v310 = vand.u32 2147483647, %v293
    %vm311 = vcmp.lt.f32.partialorder %v310, 0.0004427343
    %v312 = vsel %vm311, %v309, %v306
    %v313 = vadd.f32 %v303, %v312
    %v314 = vlaneseq
    %v315 = vand.u32 %v314, 127
    %vm316 = vcmp.lt.s32.totalorder %v315, 4
    %v317 = vsel %vm316, %v302, %v313
    %318 = vst [vmem:[%s2] sm:$0xff] %v317
    // Predicated region
    $region14: #{policy_net_forward.1} parent=1 // pred_check
      _
    $region15: #{policy_net_forward.1} parent=1 // pred_check_branch
      %320 = sbr.rel (0) target = $region17
    $region16: #{policy_net_forward.1} parent=1 // pred_region
      _
    $region17: #{policy_net_forward.1} parent=1 // pred_fallthru
      _
    // Predicated region
    $region18: #{policy_net_forward.1} parent=1 // pred_check
      _
    $region19: #{policy_net_forward.1} parent=1 // pred_check_branch
      %322 = sbr.rel (0) target = $region21
    $region20: #{policy_net_forward.1} parent=1 // pred_region
      _
    $region21: #{policy_net_forward.1} parent=1 // pred_fallthru
      _
    %323 = vsyncpa [#allocation3], 1

</llo_original>
